<compile_context>
chip_gen: v7x
topology: tpu7x:2x2x1
jax: 0.10.0
libtpu: 0.0.40
codegen_flags: <defaults>
</compile_context>

<pallas_src>
import jax
import jax.numpy as jnp
import numpy as np
from jax import lax
from jax.experimental import pallas as pl

# Module config: convolutional_block(4, 8, 3, padding='same', image_dim=16), batch 2.
N, CIN, IMG = 2, 4, 16
COUT, KSZ = 8, 3
HO = WO = (IMG + 2 - 3) // 2 + 1     # 8: MaxPool2d(3, stride=2, padding=1) output size
HP = 2 * HO + 2                      # 18 conv rows on the pool-extended grid (h' = pool pos + 1)
HPAD = IMG + 4                       # 20 padded input rows (pool pad 1 + conv pad 1, top & bottom)
WPAD = 32                            # padded input cols, chosen so WPAD*CIN = 128 lanes
KLANES = WPAD * CIN                  # 128: matmul contraction width (one full vreg)
SLAB = WO * COUT                     # 64: lanes per pool-window column slab
LANES = 3 * SLAB                     # 192: matmul output lanes (3 slabs: w' = 2q, 2q+1, 2q+2)


def conv_block_kernel(xp_ref, w_ref, b_ref, o_ref):
    # hoisted loop invariants
    w0 = w_ref[0]
    w1 = w_ref[1]
    w2 = w_ref[2]
    brow = b_ref[...]                                                    # (1, 192)
    # top pool-pad row (h' == 0) must read as 0 (ReLU >= 0 makes 0 equivalent to -inf padding)
    row_keep = lax.broadcasted_iota(jnp.int32, (HP, LANES), 0) >= 1

    for n in range(N):                                                   # static unroll, N = 2
        xn = xp_ref[n]                                                   # (20, 128)
        # conv as banded matmul, accumulated in f32 over the 3 kernel rows (kh)
        acc = jnp.dot(xn[0:HP, :], w0, preferred_element_type=jnp.float32)       # (18, 192)
        acc += jnp.dot(xn[1:HP + 1, :], w1, preferred_element_type=jnp.float32)
        acc += jnp.dot(xn[2:HP + 2, :], w2, preferred_element_type=jnp.float32)
        # bias + ReLU + pool-pad row mask in one pass (left pad column already zeroed in W / b)
        y = jnp.where(row_keep, jnp.maximum(acc + brow, 0.0), 0.0)       # (18, 192)
        # width pool: the Toeplitz column layout already groups the pool window's three columns
        # (w' = 2q, 2q+1, 2q+2) into three 64-lane slabs -> elementwise max, no lane movement.
        mw = jnp.maximum(jnp.maximum(y[:, 0:SLAB], y[:, SLAB:2 * SLAB]),
                         y[:, 2 * SLAB:3 * SLAB])                        # (18, 64)
        # height pool: 3-row window max ...
        mh = jnp.maximum(jnp.maximum(mw[0:2 * HO, :], mw[1:2 * HO + 1, :]),
                         mw[2:2 * HO + 2, :])                            # (16, 64)
        # ... keep even-start windows (stride 2) via static single-row slices (tiny sublane gather)
        out_n = jnp.concatenate([mh[2 * p:2 * p + 1, :] for p in range(HO)], axis=0)  # (8, 64)
        o_ref[n * HO:(n + 1) * HO, :] = out_n


@jax.jit
def convolutional_block_forward(x_nchw, w_oihw, bias):
    # --- input: NCHW -> NHWC, pad by (pool pad 1 + conv pad 1), align W*CIN to 128 lanes -------
    x = jnp.transpose(x_nchw, (0, 2, 3, 1))                              # (N, 16, 16, CIN)
    xp = jnp.pad(x, ((0, 0), (2, 2), (2, WPAD - IMG - 2), (0, 0)))        # (N, 20, 32, CIN)
    xp = xp.reshape(N, HPAD, KLANES)                                      # (N, 20, 128), contiguous

    # --- block-Toeplitz conv weight: row (ww*CIN + c), column (s*64 + q*8 + co) -----------------
    # column (s, q, co) is conv output column w' = 2q + s (the three columns of pool window q);
    # entry = w[kh, kw = ww - w', c, co] when 0 <= ww - w' < 3, else 0.
    wt = jnp.transpose(w_oihw, (2, 3, 1, 0))                              # (kh, kw, c, co)
    ww = np.arange(WPAD)
    wprime = 2 * np.arange(WO)[None, :] + np.arange(3)[:, None]           # (3, WO): w'(s, q)
    kw_req = ww[:, None, None] - wprime[None, :, :]                       # (WPAD, 3, WO)
    band = ((kw_req >= 0) & (kw_req < KSZ)).astype(np.float32)
    kw_safe = np.clip(kw_req, 0, KSZ - 1)
    g = wt[:, kw_safe, :, :] * band[None, :, :, :, None, None]            # (3, WPAD, 3, WO, CIN, COUT)
    wmat = jnp.transpose(g, (0, 1, 4, 2, 3, 5)).reshape(KSZ, KLANES, LANES)
    # bake the left pool-pad column (w' == 0  <->  s = 0, q = 0) to zero in weight and bias
    wmat = wmat.at[:, :, 0:COUT].set(0.0)
    bcols = jnp.tile(bias, 3 * WO).at[0:COUT].set(0.0).reshape(1, LANES)

    out2d = pl.pallas_call(
        conv_block_kernel,
        out_shape=jax.ShapeDtypeStruct((N * HO, WO * COUT), jnp.float32),
        grid=(1,),
        in_specs=[
            pl.BlockSpec((N, HPAD, KLANES), lambda i: (0, 0, 0)),
            pl.BlockSpec((KSZ, KLANES, LANES), lambda i: (0, 0, 0)),
            pl.BlockSpec((1, LANES), lambda i: (0, 0)),
        ],
        out_specs=pl.BlockSpec((N * HO, WO * COUT), lambda i: (0, 0)),
    )(xp, wmat, bcols)

    out = out2d.reshape(N, HO, WO, COUT)                                  # (n, h, w, c)
    return jnp.transpose(out, (0, 3, 1, 2))                               # NCHW (2, 8, 8, 8)


def reference_forward(x, w, b):
    y = lax.conv_general_dilated(
        x, w, window_strides=(1, 1), padding=((1, 1), (1, 1)),
        dimension_numbers=("NCHW", "OIHW", "NCHW"))
    y = jnp.maximum(y + b[None, :, None, None], 0.0)
    return lax.reduce_window(
        y, -jnp.inf, lax.max, (1, 1, 3, 3), (1, 1, 2, 2),
        padding=((0, 0), (0, 0), (1, 1), (1, 1)))


if __name__ == "__main__":
    key = jax.random.PRNGKey(0)
    kx, kw, kb = jax.random.split(key, 3)
    x = jax.random.normal(kx, (N, CIN, IMG, IMG), jnp.float32)
    # Deterministic init matching nn.Conv2d default bounds (+-1/sqrt(fan_in)).
    bound = 1.0 / np.sqrt(CIN * KSZ * KSZ)
    w = jax.random.uniform(kw, (COUT, CIN, KSZ, KSZ), jnp.float32, -bound, bound)
    b = jax.random.uniform(kb, (COUT,), jnp.float32, -bound, bound)

    out = convolutional_block_forward(x, w, b)
    out = jax.block_until_ready(out)

    ref = reference_forward(x, w, b)
    np.testing.assert_allclose(np.asarray(out), np.asarray(ref), atol=2e-2, rtol=2e-2)
    assert out.shape == (N, COUT, HO, WO)
    print("KERNEL_OK")
</pallas_src>

<mosaic_0001>
module attributes {stable_mosaic.version = 11 : i64} {
  func.func @conv_block_kernel(%arg0: i32, %arg1: memref<2x20x128xf32, #tpu.memory_space<vmem>>, %arg2: memref<3x128x192xf32, #tpu.memory_space<vmem>>, %arg3: memref<1x192xf32, #tpu.memory_space<vmem>>, %arg4: memref<16x64xf32, #tpu.memory_space<vmem>>) attributes {dimension_semantics = [#tpu.dimension_semantics<arbitrary>], iteration_bounds = array<i64: 1>, scalar_prefetch = 0 : i64, scratch_operands = 0 : i64, tpu.core_type = #tpu.core_type<tc>, window_params = [{pipeline_mode = #tpu.pipeline_mode<synchronous>, transform_indices = @transform_0, window_bounds = array<i64: 2, 20, 128>}, {pipeline_mode = #tpu.pipeline_mode<synchronous>, transform_indices = @transform_1, window_bounds = array<i64: 3, 128, 192>}, {pipeline_mode = #tpu.pipeline_mode<synchronous>, transform_indices = @transform_2, window_bounds = array<i64: 1, 192>}, {pipeline_mode = #tpu.pipeline_mode<synchronous>, transform_indices = @transform_3, window_bounds = array<i64: 16, 64>}]} {
    %c0 = arith.constant 0 : index
    %c0_0 = arith.constant 0 : index
    %c0_1 = arith.constant 0 : index
    %0 = vector.load %arg2[%c0, %c0_0, %c0_1] : memref<3x128x192xf32, #tpu.memory_space<vmem>>, vector<1x128x192xf32>
    %1 = vector.shape_cast %0 : vector<1x128x192xf32> to vector<128x192xf32>
    %c1 = arith.constant 1 : index
    %c0_2 = arith.constant 0 : index
    %c0_3 = arith.constant 0 : index
    %2 = vector.load %arg2[%c1, %c0_2, %c0_3] : memref<3x128x192xf32, #tpu.memory_space<vmem>>, vector<1x128x192xf32>
    %3 = vector.shape_cast %2 : vector<1x128x192xf32> to vector<128x192xf32>
    %c2 = arith.constant 2 : index
    %c0_4 = arith.constant 0 : index
    %c0_5 = arith.constant 0 : index
    %4 = vector.load %arg2[%c2, %c0_4, %c0_5] : memref<3x128x192xf32, #tpu.memory_space<vmem>>, vector<1x128x192xf32>
    %5 = vector.shape_cast %4 : vector<1x128x192xf32> to vector<128x192xf32>
    %c0_6 = arith.constant 0 : index
    %c0_7 = arith.constant 0 : index
    %6 = vector.load %arg3[%c0_6, %c0_7] : memref<1x192xf32, #tpu.memory_space<vmem>>, vector<1x192xf32>
    %7 = tpu.iota {dimensions = array<i32: 0>} : vector<18x192xi32>
    %c1_i32 = arith.constant 1 : i32
    %8 = vector.broadcast %c1_i32 : i32 to vector<18x192xi32>
    %9 = arith.cmpi sge, %7, %8 : vector<18x192xi32>
    %c0_8 = arith.constant 0 : index
    %c0_9 = arith.constant 0 : index
    %c0_10 = arith.constant 0 : index
    %10 = vector.load %arg1[%c0_8, %c0_9, %c0_10] : memref<2x20x128xf32, #tpu.memory_space<vmem>>, vector<1x20x128xf32>
    %11 = vector.shape_cast %10 : vector<1x20x128xf32> to vector<20x128xf32>
    %12 = vector.extract_strided_slice %11 {offsets = [0, 0], sizes = [18, 128], strides = [1, 1]} : vector<20x128xf32> to vector<18x128xf32>
    %cst = arith.constant dense<0.000000e+00> : vector<18x192xf32>
    %13 = tpu.matmul %12, %1, %cst {dimension_numbers = #tpu.dot_dimension_numbers<[1], [0], [0], [1], [0, 0, 1, 1], [], []>} : vector<18x128xf32>, vector<128x192xf32>, vector<18x192xf32> -> vector<18x192xf32>
    %14 = vector.extract_strided_slice %11 {offsets = [1, 0], sizes = [18, 128], strides = [1, 1]} : vector<20x128xf32> to vector<18x128xf32>
    %cst_11 = arith.constant dense<0.000000e+00> : vector<18x192xf32>
    %15 = tpu.matmul %14, %3, %cst_11 {dimension_numbers = #tpu.dot_dimension_numbers<[1], [0], [0], [1], [0, 0, 1, 1], [], []>} : vector<18x128xf32>, vector<128x192xf32>, vector<18x192xf32> -> vector<18x192xf32>
    %16 = arith.addf %13, %15 : vector<18x192xf32>
    %17 = vector.extract_strided_slice %11 {offsets = [2, 0], sizes = [18, 128], strides = [1, 1]} : vector<20x128xf32> to vector<18x128xf32>
    %cst_12 = arith.constant dense<0.000000e+00> : vector<18x192xf32>
    %18 = tpu.matmul %17, %5, %cst_12 {dimension_numbers = #tpu.dot_dimension_numbers<[1], [0], [0], [1], [0, 0, 1, 1], [], []>} : vector<18x128xf32>, vector<128x192xf32>, vector<18x192xf32> -> vector<18x192xf32>
    %19 = arith.addf %16, %18 : vector<18x192xf32>
    %20 = vector.broadcast %6 : vector<1x192xf32> to vector<18x192xf32>
    %21 = arith.addf %19, %20 : vector<18x192xf32>
    %cst_13 = arith.constant 0.000000e+00 : f32
    %22 = vector.broadcast %cst_13 : f32 to vector<18x192xf32>
    %23 = arith.maximumf %21, %22 : vector<18x192xf32>
    %cst_14 = arith.constant 0.000000e+00 : f32
    %24 = vector.broadcast %cst_14 : f32 to vector<18x192xf32>
    %25 = arith.select %9, %23, %24 : vector<18x192xi1>, vector<18x192xf32>
    %26 = vector.extract_strided_slice %25 {offsets = [0, 0], sizes = [18, 64], strides = [1, 1]} : vector<18x192xf32> to vector<18x64xf32>
    %27 = vector.extract_strided_slice %25 {offsets = [0, 64], sizes = [18, 64], strides = [1, 1]} : vector<18x192xf32> to vector<18x64xf32>
    %28 = arith.maximumf %26, %27 : vector<18x64xf32>
    %29 = vector.extract_strided_slice %25 {offsets = [0, 128], sizes = [18, 64], strides = [1, 1]} : vector<18x192xf32> to vector<18x64xf32>
    %30 = arith.maximumf %28, %29 : vector<18x64xf32>
    %31 = vector.extract_strided_slice %30 {offsets = [0, 0], sizes = [16, 64], strides = [1, 1]} : vector<18x64xf32> to vector<16x64xf32>
    %32 = vector.extract_strided_slice %30 {offsets = [1, 0], sizes = [16, 64], strides = [1, 1]} : vector<18x64xf32> to vector<16x64xf32>
    %33 = arith.maximumf %31, %32 : vector<16x64xf32>
    %34 = vector.extract_strided_slice %30 {offsets = [2, 0], sizes = [16, 64], strides = [1, 1]} : vector<18x64xf32> to vector<16x64xf32>
    %35 = arith.maximumf %33, %34 : vector<16x64xf32>
    %36 = vector.extract_strided_slice %35 {offsets = [0, 0], sizes = [1, 64], strides = [1, 1]} : vector<16x64xf32> to vector<1x64xf32>
    %37 = vector.extract_strided_slice %35 {offsets = [2, 0], sizes = [1, 64], strides = [1, 1]} : vector<16x64xf32> to vector<1x64xf32>
    %38 = vector.extract_strided_slice %35 {offsets = [4, 0], sizes = [1, 64], strides = [1, 1]} : vector<16x64xf32> to vector<1x64xf32>
    %39 = vector.extract_strided_slice %35 {offsets = [6, 0], sizes = [1, 64], strides = [1, 1]} : vector<16x64xf32> to vector<1x64xf32>
    %40 = vector.extract_strided_slice %35 {offsets = [8, 0], sizes = [1, 64], strides = [1, 1]} : vector<16x64xf32> to vector<1x64xf32>
    %41 = vector.extract_strided_slice %35 {offsets = [10, 0], sizes = [1, 64], strides = [1, 1]} : vector<16x64xf32> to vector<1x64xf32>
    %42 = vector.extract_strided_slice %35 {offsets = [12, 0], sizes = [1, 64], strides = [1, 1]} : vector<16x64xf32> to vector<1x64xf32>
    %43 = vector.extract_strided_slice %35 {offsets = [14, 0], sizes = [1, 64], strides = [1, 1]} : vector<16x64xf32> to vector<1x64xf32>
    %44 = tpu.concatenate %36, %37, %38, %39, %40, %41, %42, %43 in 0 : vector<1x64xf32>, vector<1x64xf32>, vector<1x64xf32>, vector<1x64xf32>, vector<1x64xf32>, vector<1x64xf32>, vector<1x64xf32>, vector<1x64xf32> -> vector<8x64xf32>
    %c0_15 = arith.constant 0 : index
    %c0_16 = arith.constant 0 : index
    %45 = vector.load %arg4[%c0_15, %c0_16] : memref<16x64xf32, #tpu.memory_space<vmem>>, vector<8x64xf32>
    tpu.vector_store %arg4[%c0_15, %c0_16], %44 {strides = array<i32>} : memref<16x64xf32, #tpu.memory_space<vmem>>, vector<8x64xf32>,
    %c1_17 = arith.constant 1 : index
    %c0_18 = arith.constant 0 : index
    %c0_19 = arith.constant 0 : index
    %46 = vector.load %arg1[%c1_17, %c0_18, %c0_19] : memref<2x20x128xf32, #tpu.memory_space<vmem>>, vector<1x20x128xf32>
    %47 = vector.shape_cast %46 : vector<1x20x128xf32> to vector<20x128xf32>
    %48 = vector.extract_strided_slice %47 {offsets = [0, 0], sizes = [18, 128], strides = [1, 1]} : vector<20x128xf32> to vector<18x128xf32>
    %cst_20 = arith.constant dense<0.000000e+00> : vector<18x192xf32>
    %49 = tpu.matmul %48, %1, %cst_20 {dimension_numbers = #tpu.dot_dimension_numbers<[1], [0], [0], [1], [0, 0, 1, 1], [], []>} : vector<18x128xf32>, vector<128x192xf32>, vector<18x192xf32> -> vector<18x192xf32>
    %50 = vector.extract_strided_slice %47 {offsets = [1, 0], sizes = [18, 128], strides = [1, 1]} : vector<20x128xf32> to vector<18x128xf32>
    %cst_21 = arith.constant dense<0.000000e+00> : vector<18x192xf32>
    %51 = tpu.matmul %50, %3, %cst_21 {dimension_numbers = #tpu.dot_dimension_numbers<[1], [0], [0], [1], [0, 0, 1, 1], [], []>} : vector<18x128xf32>, vector<128x192xf32>, vector<18x192xf32> -> vector<18x192xf32>
    %52 = arith.addf %49, %51 : vector<18x192xf32>
    %53 = vector.extract_strided_slice %47 {offsets = [2, 0], sizes = [18, 128], strides = [1, 1]} : vector<20x128xf32> to vector<18x128xf32>
    %cst_22 = arith.constant dense<0.000000e+00> : vector<18x192xf32>
    %54 = tpu.matmul %53, %5, %cst_22 {dimension_numbers = #tpu.dot_dimension_numbers<[1], [0], [0], [1], [0, 0, 1, 1], [], []>} : vector<18x128xf32>, vector<128x192xf32>, vector<18x192xf32> -> vector<18x192xf32>
    %55 = arith.addf %52, %54 : vector<18x192xf32>
    %56 = vector.broadcast %6 : vector<1x192xf32> to vector<18x192xf32>
    %57 = arith.addf %55, %56 : vector<18x192xf32>
    %cst_23 = arith.constant 0.000000e+00 : f32
    %58 = vector.broadcast %cst_23 : f32 to vector<18x192xf32>
    %59 = arith.maximumf %57, %58 : vector<18x192xf32>
    %cst_24 = arith.constant 0.000000e+00 : f32
    %60 = vector.broadcast %cst_24 : f32 to vector<18x192xf32>
    %61 = arith.select %9, %59, %60 : vector<18x192xi1>, vector<18x192xf32>
    %62 = vector.extract_strided_slice %61 {offsets = [0, 0], sizes = [18, 64], strides = [1, 1]} : vector<18x192xf32> to vector<18x64xf32>
    %63 = vector.extract_strided_slice %61 {offsets = [0, 64], sizes = [18, 64], strides = [1, 1]} : vector<18x192xf32> to vector<18x64xf32>
    %64 = arith.maximumf %62, %63 : vector<18x64xf32>
    %65 = vector.extract_strided_slice %61 {offsets = [0, 128], sizes = [18, 64], strides = [1, 1]} : vector<18x192xf32> to vector<18x64xf32>
    %66 = arith.maximumf %64, %65 : vector<18x64xf32>
    %67 = vector.extract_strided_slice %66 {offsets = [0, 0], sizes = [16, 64], strides = [1, 1]} : vector<18x64xf32> to vector<16x64xf32>
    %68 = vector.extract_strided_slice %66 {offsets = [1, 0], sizes = [16, 64], strides = [1, 1]} : vector<18x64xf32> to vector<16x64xf32>
    %69 = arith.maximumf %67, %68 : vector<16x64xf32>
    %70 = vector.extract_strided_slice %66 {offsets = [2, 0], sizes = [16, 64], strides = [1, 1]} : vector<18x64xf32> to vector<16x64xf32>
    %71 = arith.maximumf %69, %70 : vector<16x64xf32>
    %72 = vector.extract_strided_slice %71 {offsets = [0, 0], sizes = [1, 64], strides = [1, 1]} : vector<16x64xf32> to vector<1x64xf32>
    %73 = vector.extract_strided_slice %71 {offsets = [2, 0], sizes = [1, 64], strides = [1, 1]} : vector<16x64xf32> to vector<1x64xf32>
    %74 = vector.extract_strided_slice %71 {offsets = [4, 0], sizes = [1, 64], strides = [1, 1]} : vector<16x64xf32> to vector<1x64xf32>
    %75 = vector.extract_strided_slice %71 {offsets = [6, 0], sizes = [1, 64], strides = [1, 1]} : vector<16x64xf32> to vector<1x64xf32>
    %76 = vector.extract_strided_slice %71 {offsets = [8, 0], sizes = [1, 64], strides = [1, 1]} : vector<16x64xf32> to vector<1x64xf32>
    %77 = vector.extract_strided_slice %71 {offsets = [10, 0], sizes = [1, 64], strides = [1, 1]} : vector<16x64xf32> to vector<1x64xf32>
    %78 = vector.extract_strided_slice %71 {offsets = [12, 0], sizes = [1, 64], strides = [1, 1]} : vector<16x64xf32> to vector<1x64xf32>
    %79 = vector.extract_strided_slice %71 {offsets = [14, 0], sizes = [1, 64], strides = [1, 1]} : vector<16x64xf32> to vector<1x64xf32>
    %80 = tpu.concatenate %72, %73, %74, %75, %76, %77, %78, %79 in 0 : vector<1x64xf32>, vector<1x64xf32>, vector<1x64xf32>, vector<1x64xf32>, vector<1x64xf32>, vector<1x64xf32>, vector<1x64xf32>, vector<1x64xf32> -> vector<8x64xf32>
    %c8 = arith.constant 8 : index
    %c0_25 = arith.constant 0 : index
    %81 = vector.load %arg4[%c8, %c0_25] : memref<16x64xf32, #tpu.memory_space<vmem>>, vector<8x64xf32>
    tpu.vector_store %arg4[%c8, %c0_25], %80 {strides = array<i32>} : memref<16x64xf32, #tpu.memory_space<vmem>>, vector<8x64xf32>,
    return
  }
  func.func @transform_0(%arg0: i32) -> (i32, i32, i32) {
    %c0_i32 = arith.constant 0 : i32
    %c0_i32_0 = arith.constant 0 : i32
    %c0_i32_1 = arith.constant 0 : i32
    %c0_i32_2 = arith.constant 0 : i32
    return %c0_i32, %c0_i32_0, %c0_i32_1 : i32, i32, i32
  }
  func.func @transform_1(%arg0: i32) -> (i32, i32, i32) {
    %c0_i32 = arith.constant 0 : i32
    %c0_i32_0 = arith.constant 0 : i32
    %c0_i32_1 = arith.constant 0 : i32
    %c0_i32_2 = arith.constant 0 : i32
    return %c0_i32, %c0_i32_0, %c0_i32_1 : i32, i32, i32
  }
  func.func @transform_2(%arg0: i32) -> (i32, i32) {
    %c0_i32 = arith.constant 0 : i32
    %c0_i32_0 = arith.constant 0 : i32
    %c0_i32_1 = arith.constant 0 : i32
    return %c0_i32, %c0_i32_0 : i32, i32
  }
  func.func @transform_3(%arg0: i32) -> (i32, i32) {
    %c0_i32 = arith.constant 0 : i32
    %c0_i32_0 = arith.constant 0 : i32
    %c0_i32_1 = arith.constant 0 : i32
    return %c0_i32, %c0_i32_0 : i32, i32
  }
}

</mosaic_0001>

<llo_original>
// kernel: tile.8
$region0: #{tile.8}
  #allocation0 [shape = 's32[1]{0}', space=sflag, size = 0x4, scoped, tag = 'scoped memory for tile.8']
  %s0 = inlined_call_operand.vmem [shape: f32[8], index: 0, kind: input, shape index: {}]
  %s1 = inlined_call_operand.vmem [shape: f32[24,8], index: 1, kind: output, shape index: {}]
  // Predicated region
  $region2: #{tile.8} parent=0 // pred_check
    _
  $region3: #{tile.8} parent=0 // pred_check_branch
    %3 = sbr.rel (0) target = $region5
  $region4: #{tile.8} parent=0 // pred_region
    _
  $region5: #{tile.8} parent=0 // pred_fallthru
    _
  %v4 = vld [vmem:[%s0] ss:$0 sm:$0xff]
  %5 = vst [vmem:[%s1] sm:$0xff] %v4
  %s6 = scalar_lea.vmem %s1, 8
  %7 = vst [vmem:[%s6] sm:$0xff] %v4
  %s8 = scalar_lea.vmem %s1, 16
  %9 = vst [vmem:[%s8] sm:$0xff] %v4

// kernel: convolutional_block_forward.1
$region0: #{convolutional_block_forward.1}
  #allocation0 [shape = 'u32[]', space=smem, size = 0x4, offset = 0x4, fixed_abs, tag = 'smem constant byte address 0x4 - core index']
  #allocation1 [shape = 'u32[144,128]{1,0:T(1,128)}', space=vmem, size = 0x12000, scoped, tag = 'internal scratch']
  %s0 = inlined_call_operand.vmem [shape: f32[2,20,128], index: 0, kind: input, shape index: {}]
  %s1 = inlined_call_operand.vmem [shape: f32[3,128,192], index: 1, kind: input, shape index: {}]
  %s2 = inlined_call_operand.vmem [shape: f32[1,192], index: 2, kind: input, shape index: {}]
  %s3 = inlined_call_operand.vmem [shape: f32[16,64], index: 3, kind: output, shape index: {}]
  %s4 = sld [smem:[#allocation0]]
  $region22: #{convolutional_block_forward.1} parent=0
    _
  %s6 = ssub.s32 1, %s4
  %s7 = scalar_select 0, %s6, %s4
  // Predicated region
  $region2: #{convolutional_block_forward.1} parent=0 // pred_check
    _
  $region3: #{convolutional_block_forward.1} parent=0 // pred_check_branch
    %9 = sbr.rel (0) target = $region5
  $region4: #{convolutional_block_forward.1} parent=0 // pred_region
    _
  $region5: #{convolutional_block_forward.1} parent=0 // pred_fallthru
    _
  // Predicated region
  $region6: #{convolutional_block_forward.1} parent=0 // pred_check
    _
  $region7: #{convolutional_block_forward.1} parent=0 // pred_check_branch
    %11 = sbr.rel (0) target = $region9
  $region8: #{convolutional_block_forward.1} parent=0 // pred_region
    _
  $region9: #{convolutional_block_forward.1} parent=0 // pred_fallthru
    _
  // Predicated region
  $region10: #{convolutional_block_forward.1} parent=0 // pred_check
    _
  $region11: #{convolutional_block_forward.1} parent=0 // pred_check_branch
    %13 = sbr.rel (0) target = $region13
  $region12: #{convolutional_block_forward.1} parent=0 // pred_region
    _
  $region13: #{convolutional_block_forward.1} parent=0 // pred_fallthru
    _
  %v14 = vld [vmem:[%s1] sm:$0xff]
  %v15 = vld [vmem:[%s1 + $0x8] sm:$0xff]
  %v16 = vld [vmem:[%s1 + $0x10] sm:$0xff]
  %v17 = vld [vmem:[%s1 + $0x18] sm:$0xff]
  %v18 = vld [vmem:[%s1 + $0x20] sm:$0xff]
  %v19 = vld [vmem:[%s1 + $0x28] sm:$0xff]
  %v20 = vld [vmem:[%s1 + $0x30] sm:$0xff]
  %v21 = vld [vmem:[%s1 + $0x38] sm:$0xff]
  %v22 = vld [vmem:[%s1 + $0x40] sm:$0xff]
  %v23 = vld [vmem:[%s1 + $0x48] sm:$0xff]
  %v24 = vld [vmem:[%s1 + $0x50] sm:$0xff]
  %v25 = vld [vmem:[%s1 + $0x58] sm:$0xff]
  %v26 = vld [vmem:[%s1 + $0x60] sm:$0xff]
  %v27 = vld [vmem:[%s1 + $0x68] sm:$0xff]
  %v28 = vld [vmem:[%s1 + $0x70] sm:$0xff]
  %v29 = vld [vmem:[%s1 + $0x78] sm:$0xff]
  %v30 = vld [vmem:[%s1 + $0x80] sm:$0xff]
  %v31 = vld [vmem:[%s1 + $0x88] sm:$0xff]
  %v32 = vld [vmem:[%s1 + $0x90] sm:$0xff]
  %v33 = vld [vmem:[%s1 + $0x98] sm:$0xff]
  %v34 = vld [vmem:[%s1 + $0xa0] sm:$0xff]
  %v35 = vld [vmem:[%s1 + $0xa8] sm:$0xff]
  %v36 = vld [vmem:[%s1 + $0xb0] sm:$0xff]
  %v37 = vld [vmem:[%s1 + $0xb8] sm:$0xff]
  %v38 = vld [vmem:[%s1 + $0xc0] sm:$0xff]
  %v39 = vld [vmem:[%s1 + $0xc8] sm:$0xff]
  %v40 = vld [vmem:[%s1 + $0xd0] sm:$0xff]
  %v41 = vld [vmem:[%s1 + $0xd8] sm:$0xff]
  %v42 = vld [vmem:[%s1 + $0xe0] sm:$0xff]
  %v43 = vld [vmem:[%s1 + $0xe8] sm:$0xff]
  %v44 = vld [vmem:[%s1 + $0xf0] sm:$0xff]
  %v45 = vld [vmem:[%s1 + $0xf8] sm:$0xff]
  %s46 = scalar_lea.vmem %s1, 256
  %v47 = vld [vmem:[%s46] sm:$0xff]
  %v48 = vld [vmem:[%s46 + $0x8] sm:$0xff]
  %v49 = vld [vmem:[%s46 + $0x10] sm:$0xff]
  %v50 = vld [vmem:[%s46 + $0x18] sm:$0xff]
  %v51 = vld [vmem:[%s46 + $0x20] sm:$0xff]
  %v52 = vld [vmem:[%s46 + $0x28] sm:$0xff]
  %v53 = vld [vmem:[%s46 + $0x30] sm:$0xff]
  %v54 = vld [vmem:[%s46 + $0x38] sm:$0xff]
  %v55 = vld [vmem:[%s46 + $0x40] sm:$0xff]
  %v56 = vld [vmem:[%s46 + $0x48] sm:$0xff]
  %v57 = vld [vmem:[%s46 + $0x50] sm:$0xff]
  %v58 = vld [vmem:[%s46 + $0x58] sm:$0xff]
  %v59 = vld [vmem:[%s46 + $0x60] sm:$0xff]
  %v60 = vld [vmem:[%s46 + $0x68] sm:$0xff]
  %v61 = vld [vmem:[%s46 + $0x70] sm:$0xff]
  %v62 = vld [vmem:[%s46 + $0x78] sm:$0xff]
  %v63 = vld [vmem:[%s46 + $0x80] sm:$0xff]
  %v64 = vld [vmem:[%s46 + $0x88] sm:$0xff]
  %v65 = vld [vmem:[%s46 + $0x90] sm:$0xff]
  %v66 = vld [vmem:[%s46 + $0x98] sm:$0xff]
  %v67 = vld [vmem:[%s46 + $0xa0] sm:$0xff]
  %v68 = vld [vmem:[%s46 + $0xa8] sm:$0xff]
  %v69 = vld [vmem:[%s46 + $0xb0] sm:$0xff]
  %v70 = vld [vmem:[%s46 + $0xb8] sm:$0xff]
  %v71 = vld [vmem:[%s46 + $0xc0] sm:$0xff]
  %v72 = vld [vmem:[%s46 + $0xc8] sm:$0xff]
  %v73 = vld [vmem:[%s46 + $0xd0] sm:$0xff]
  %v74 = vld [vmem:[%s46 + $0xd8] sm:$0xff]
  %v75 = vld [vmem:[%s46 + $0xe0] sm:$0xff]
  %v76 = vld [vmem:[%s46 + $0xe8] sm:$0xff]
  %v77 = vld [vmem:[%s46 + $0xf0] sm:$0xff]
  %v78 = vld [vmem:[%s46 + $0xf8] sm:$0xff]
  %s79 = scalar_lea.vmem %s1, 512
  %v80 = vld [vmem:[%s79] sm:$0xff]
  %v81 = vld [vmem:[%s79 + $0x8] sm:$0xff]
  %v82 = vld [vmem:[%s79 + $0x10] sm:$0xff]
  %v83 = vld [vmem:[%s79 + $0x18] sm:$0xff]
  %v84 = vld [vmem:[%s79 + $0x20] sm:$0xff]
  %v85 = vld [vmem:[%s79 + $0x28] sm:$0xff]
  %v86 = vld [vmem:[%s79 + $0x30] sm:$0xff]
  %v87 = vld [vmem:[%s79 + $0x38] sm:$0xff]
  %v88 = vld [vmem:[%s79 + $0x40] sm:$0xff]
  %v89 = vld [vmem:[%s79 + $0x48] sm:$0xff]
  %v90 = vld [vmem:[%s79 + $0x50] sm:$0xff]
  %v91 = vld [vmem:[%s79 + $0x58] sm:$0xff]
  %v92 = vld [vmem:[%s79 + $0x60] sm:$0xff]
  %v93 = vld [vmem:[%s79 + $0x68] sm:$0xff]
  %v94 = vld [vmem:[%s79 + $0x70] sm:$0xff]
  %v95 = vld [vmem:[%s79 + $0x78] sm:$0xff]
  %v96 = vld [vmem:[%s79 + $0x80] sm:$0xff]
  %v97 = vld [vmem:[%s79 + $0x88] sm:$0xff]
  %v98 = vld [vmem:[%s79 + $0x90] sm:$0xff]
  %v99 = vld [vmem:[%s79 + $0x98] sm:$0xff]
  %v100 = vld [vmem:[%s79 + $0xa0] sm:$0xff]
  %v101 = vld [vmem:[%s79 + $0xa8] sm:$0xff]
  %v102 = vld [vmem:[%s79 + $0xb0] sm:$0xff]
  %v103 = vld [vmem:[%s79 + $0xb8] sm:$0xff]
  %v104 = vld [vmem:[%s79 + $0xc0] sm:$0xff]
  %v105 = vld [vmem:[%s79 + $0xc8] sm:$0xff]
  %v106 = vld [vmem:[%s79 + $0xd0] sm:$0xff]
  %v107 = vld [vmem:[%s79 + $0xd8] sm:$0xff]
  %v108 = vld [vmem:[%s79 + $0xe0] sm:$0xff]
  %v109 = vld [vmem:[%s79 + $0xe8] sm:$0xff]
  %v110 = vld [vmem:[%s79 + $0xf0] sm:$0xff]
  %v111 = vld [vmem:[%s79 + $0xf8] sm:$0xff]
  %v112 = vld [vmem:[%s2] sm:$0x3]
  %v113 = vlaneseq
  %v114 = vshrl.u32 %v113, 7
  %v115 = vadd.s32 %v114, 8
  %v116 = vadd.s32 %v114, 16
  %vm117 = vcmp.ge.s32.totalorder %v114, 1
  %vm118 = vcmp.ge.s32.totalorder %v115, 1
  %vm119 = vcmp.ge.s32.totalorder %v116, 1
  %v120 = vld [vmem:[%s0] sm:$0xff]
  %v121 = vld [vmem:[%s0 + $0x8] sm:$0xff]
  %v122 = vld [vmem:[%s0 + $0x10] sm:$0xf]
  %vm126 = vcmask 1046528
  %v127 = vrot.slane %v120, 1
  %v128 = vrot.slane %v121, 1
  %v129 = vsel %vm126, %v127, %v128
  %v130 = vrot.slane %v122, 1
  %v131 = vsel %vm126, %v128, %v130
  %135 = vmatprep.subr.mxu0 %v48
  %136 = vmatpush1.msra.mxu0 %v47
  %137 = vmatprep.subr.mxu0 %v50
  %138 = vmatpush1.msra.mxu0 %v49
  %139 = vmatprep.subr.mxu0 %v52
  %140 = vmatpush1.msra.mxu0 %v51
  %141 = vmatprep.subr.mxu0 %v54
  %142 = vmatpush1.msra.mxu0 %v53
  %143 = vmatprep.subr.mxu0 %v56
  %144 = vmatpush1.msra.mxu0 %v55
  %145 = vmatprep.subr.mxu0 %v58
  %146 = vmatpush1.msra.mxu0 %v57
  %147 = vmatprep.subr.mxu0 %v60
  %148 = vmatpush1.msra.mxu0 %v59
  %149 = vmatprep.subr.mxu0 %v62
  %150 = vmatpush1.msra.mxu0 %v61
  %151 = vmatprep.subr.mxu0 %v64
  %152 = vmatpush1.msra.mxu0 %v63
  %153 = vmatprep.subr.mxu0 %v66
  %154 = vmatpush1.msra.mxu0 %v65
  %155 = vmatprep.subr.mxu0 %v68
  %156 = vmatpush1.msra.mxu0 %v67
  %157 = vmatprep.subr.mxu0 %v70
  %158 = vmatpush1.msra.mxu0 %v69
  %159 = vmatprep.subr.mxu0 %v72
  %160 = vmatpush1.msra.mxu0 %v71
  %161 = vmatprep.subr.mxu0 %v74
  %162 = vmatpush1.msra.mxu0 %v73
  %163 = vmatprep.subr.mxu0 %v76
  %164 = vmatpush1.msra.mxu0 %v75
  %165 = vmatprep.subr.mxu0 %v78
  %166 = vmatpush1.msra.mxu0 %v77
  %167 = vmatprep.subr.mxu0 0.0
  %168 = vmatpush1.msra.mxu0 0.0
  %169 = vmatprep.subr.mxu0 0.0
  %170 = vmatpush1.msra.mxu0 0.0
  %171 = vmatprep.subr.mxu0 0.0
  %172 = vmatpush1.msra.mxu0 0.0
  %173 = vmatprep.subr.mxu0 0.0
  %174 = vmatpush1.msra.mxu0 0.0
  %175 = vmatprep.subr.mxu0 0.0
  %176 = vmatpush1.msra.mxu0 0.0
  %177 = vmatprep.subr.mxu0 0.0
  %178 = vmatpush1.msra.mxu0 0.0
  %179 = vmatprep.subr.mxu0 0.0
  %180 = vmatpush1.msra.mxu0 0.0
  %181 = vmatprep.subr.mxu0 0.0
  %182 = vmatpush1.msra.mxu0 0.0
  %183 = vmatprep.subr.mxu0 0.0
  %184 = vmatpush1.msra.mxu0 0.0
  %185 = vmatprep.subr.mxu0 0.0
  %186 = vmatpush1.msra.mxu0 0.0
  %187 = vmatprep.subr.mxu0 0.0
  %188 = vmatpush1.msra.mxu0 0.0
  %189 = vmatprep.subr.mxu0 0.0
  %190 = vmatpush1.msra.mxu0 0.0
  %191 = vmatprep.subr.mxu0 0.0
  %192 = vmatpush1.msra.mxu0 0.0
  %193 = vmatprep.subr.mxu0 0.0
  %194 = vmatpush1.msra.mxu0 0.0
  %195 = vmatprep.subr.mxu0 0.0
  %196 = vmatpush1.msra.mxu0 0.0
  %197 = vmatprep.subr.mxu0 0.0
  %198 = vmatpush1.msra.mxu0 0.0
  %199 = vmatprep.mubr.f32.mxu0 0.0
  %200 = vmatmul.mubr.f32.gmra.mrb[0].mxu0 %v129
  %v201 = vpop.f32.mrb[0].mxu0
  %v202 = vadd.f32 0.0, %v201
  %v203 = vpop.f32.mrb[0].mxu0
  %v204 = vadd.f32 0.0, %v203
  %205 = vmatprep.mubr.f32.mxu0 0.0
  %206 = vmatmul.mubr.f32.gmra.mrb[0].mxu0 %v131
  %v207 = vpop.f32.mrb[0].mxu0
  %v208 = vadd.f32 0.0, %v207
  %v209 = vpop.f32.mrb[0].mxu0
  %v210 = vadd.f32 0.0, %v209
  %211 = vmatprep.mubr.f32.mxu0 0.0
  %212 = vmatmul.mubr.f32.gmra.mrb[0].mxu0 %v130
  %v213 = vpop.f32.mrb[0].mxu0
  %v214 = vadd.f32 0.0, %v213
  %v215 = vpop.f32.mrb[0].mxu0
  %v216 = vadd.f32 0.0, %v215
  %217 = vdwg.mxu0
  %218 = vmatprep.subr.mxu0 %v15
  %219 = vmatpush1.msra.mxu0 %v14
  %220 = vmatprep.subr.mxu0 %v17
  %221 = vmatpush1.msra.mxu0 %v16
  %222 = vmatprep.subr.mxu0 %v19
  %223 = vmatpush1.msra.mxu0 %v18
  %224 = vmatprep.subr.mxu0 %v21
  %225 = vmatpush1.msra.mxu0 %v20
  %226 = vmatprep.subr.mxu0 %v23
  %227 = vmatpush1.msra.mxu0 %v22
  %228 = vmatprep.subr.mxu0 %v25
  %229 = vmatpush1.msra.mxu0 %v24
  %230 = vmatprep.subr.mxu0 %v27
  %231 = vmatpush1.msra.mxu0 %v26
  %232 = vmatprep.subr.mxu0 %v29
  %233 = vmatpush1.msra.mxu0 %v28
  %234 = vmatprep.subr.mxu0 %v31
  %235 = vmatpush1.msra.mxu0 %v30
  %236 = vmatprep.subr.mxu0 %v33
  %237 = vmatpush1.msra.mxu0 %v32
  %238 = vmatprep.subr.mxu0 %v35
  %239 = vmatpush1.msra.mxu0 %v34
  %240 = vmatprep.subr.mxu0 %v37
  %241 = vmatpush1.msra.mxu0 %v36
  %242 = vmatprep.subr.mxu0 %v39
  %243 = vmatpush1.msra.mxu0 %v38
  %244 = vmatprep.subr.mxu0 %v41
  %245 = vmatpush1.msra.mxu0 %v40
  %246 = vmatprep.subr.mxu0 %v43
  %247 = vmatpush1.msra.mxu0 %v42
  %248 = vmatprep.subr.mxu0 %v45
  %249 = vmatpush1.msra.mxu0 %v44
  %250 = vmatprep.subr.mxu0 0.0
  %251 = vmatpush1.msra.mxu0 0.0
  %252 = vmatprep.subr.mxu0 0.0
  %253 = vmatpush1.msra.mxu0 0.0
  %254 = vmatprep.subr.mxu0 0.0
  %255 = vmatpush1.msra.mxu0 0.0
  %256 = vmatprep.subr.mxu0 0.0
  %257 = vmatpush1.msra.mxu0 0.0
  %258 = vmatprep.subr.mxu0 0.0
  %259 = vmatpush1.msra.mxu0 0.0
  %260 = vmatprep.subr.mxu0 0.0
  %261 = vmatpush1.msra.mxu0 0.0
  %262 = vmatprep.subr.mxu0 0.0
  %263 = vmatpush1.msra.mxu0 0.0
  %264 = vmatprep.subr.mxu0 0.0
  %265 = vmatpush1.msra.mxu0 0.0
  %266 = vmatprep.subr.mxu0 0.0
  %267 = vmatpush1.msra.mxu0 0.0
  %268 = vmatprep.subr.mxu0 0.0
  %269 = vmatpush1.msra.mxu0 0.0
  %270 = vmatprep.subr.mxu0 0.0
  %271 = vmatpush1.msra.mxu0 0.0
  %272 = vmatprep.subr.mxu0 0.0
  %273 = vmatpush1.msra.mxu0 0.0
  %274 = vmatprep.subr.mxu0 0.0
  %275 = vmatpush1.msra.mxu0 0.0
  %276 = vmatprep.subr.mxu0 0.0
  %277 = vmatpush1.msra.mxu0 0.0
  %278 = vmatprep.subr.mxu0 0.0
  %279 = vmatpush1.msra.mxu0 0.0
  %280 = vmatprep.subr.mxu0 0.0
  %281 = vmatpush1.msra.mxu0 0.0
  %282 = vmatprep.mubr.f32.mxu0 0.0
  %283 = vmatmul.mubr.f32.gmra.mrb[0].mxu0 %v120
  %v284 = vpop.f32.mrb[0].mxu0
  %v285 = vadd.f32 %v202, %v284
  %v286 = vpop.f32.mrb[0].mxu0
  %v287 = vadd.f32 %v204, %v286
  %288 = vmatprep.mubr.f32.mxu0 0.0
  %289 = vmatmul.mubr.f32.gmra.mrb[0].mxu0 %v121
  %v290 = vpop.f32.mrb[0].mxu0
  %v291 = vadd.f32 %v208, %v290
  %v292 = vpop.f32.mrb[0].mxu0
  %v293 = vadd.f32 %v210, %v292
  %294 = vmatprep.mubr.f32.mxu0 0.0
  %295 = vmatmul.mubr.f32.gmra.mrb[0].mxu0 %v122
  %v296 = vpop.f32.mrb[0].mxu0
  %v297 = vadd.f32 %v214, %v296
  %v298 = vpop.f32.mrb[0].mxu0
  %v299 = vadd.f32 %v216, %v298
  %300 = vdwg.mxu0
  %vm301 = vcmask 1045504
  %v302 = vrot.slane %v120, 2
  %v303 = vrot.slane %v121, 2
  %v304 = vsel %vm301, %v302, %v303
  %v305 = vrot.slane %v122, 2
  %v306 = vsel %vm301, %v303, %v305
  %310 = vmatprep.subr.mxu0 %v81
  %311 = vmatpush1.msra.mxu0 %v80
  %312 = vmatprep.subr.mxu0 %v83
  %313 = vmatpush1.msra.mxu0 %v82
  %314 = vmatprep.subr.mxu0 %v85
  %315 = vmatpush1.msra.mxu0 %v84
  %316 = vmatprep.subr.mxu0 %v87
  %317 = vmatpush1.msra.mxu0 %v86
  %318 = vmatprep.subr.mxu0 %v89
  %319 = vmatpush1.msra.mxu0 %v88
  %320 = vmatprep.subr.mxu0 %v91
  %321 = vmatpush1.msra.mxu0 %v90
  %322 = vmatprep.subr.mxu0 %v93
  %323 = vmatpush1.msra.mxu0 %v92
  %324 = vmatprep.subr.mxu0 %v95
  %325 = vmatpush1.msra.mxu0 %v94
  %326 = vmatprep.subr.mxu0 %v97
  %327 = vmatpush1.msra.mxu0 %v96
  %328 = vmatprep.subr.mxu0 %v99
  %329 = vmatpush1.msra.mxu0 %v98
  %330 = vmatprep.subr.mxu0 %v101
  %331 = vmatpush1.msra.mxu0 %v100
  %332 = vmatprep.subr.mxu0 %v103
  %333 = vmatpush1.msra.mxu0 %v102
  %334 = vmatprep.subr.mxu0 %v105
  %335 = vmatpush1.msra.mxu0 %v104
  %336 = vmatprep.subr.mxu0 %v107
  %337 = vmatpush1.msra.mxu0 %v106
  %338 = vmatprep.subr.mxu0 %v109
  %339 = vmatpush1.msra.mxu0 %v108
  %340 = vmatprep.subr.mxu0 %v111
  %341 = vmatpush1.msra.mxu0 %v110
  %342 = vmatprep.subr.mxu0 0.0
  %343 = vmatpush1.msra.mxu0 0.0
  %344 = vmatprep.subr.mxu0 0.0
  %345 = vmatpush1.msra.mxu0 0.0
  %346 = vmatprep.subr.mxu0 0.0
  %347 = vmatpush1.msra.mxu0 0.0
  %348 = vmatprep.subr.mxu0 0.0
  %349 = vmatpush1.msra.mxu0 0.0
  %350 = vmatprep.subr.mxu0 0.0
  %351 = vmatpush1.msra.mxu0 0.0
  %352 = vmatprep.subr.mxu0 0.0
  %353 = vmatpush1.msra.mxu0 0.0
  %354 = vmatprep.subr.mxu0 0.0
  %355 = vmatpush1.msra.mxu0 0.0
  %356 = vmatprep.subr.mxu0 0.0
  %357 = vmatpush1.msra.mxu0 0.0
  %358 = vmatprep.subr.mxu0 0.0
  %359 = vmatpush1.msra.mxu0 0.0
  %360 = vmatprep.subr.mxu0 0.0
  %361 = vmatpush1.msra.mxu0 0.0
  %362 = vmatprep.subr.mxu0 0.0
  %363 = vmatpush1.msra.mxu0 0.0
  %364 = vmatprep.subr.mxu0 0.0
  %365 = vmatpush1.msra.mxu0 0.0
  %366 = vmatprep.subr.mxu0 0.0
  %367 = vmatpush1.msra.mxu0 0.0
  %368 = vmatprep.subr.mxu0 0.0
  %369 = vmatpush1.msra.mxu0 0.0
  %370 = vmatprep.subr.mxu0 0.0
  %371 = vmatpush1.msra.mxu0 0.0
  %372 = vmatprep.subr.mxu0 0.0
  %373 = vmatpush1.msra.mxu0 0.0
  %374 = vmatprep.mubr.f32.mxu0 0.0
  %375 = vmatmul.mubr.f32.gmra.mrb[0].mxu0 %v304
  %v376 = vpop.f32.mrb[0].mxu0
  %v377 = vadd.f32 0.0, %v376
  %v378 = vpop.f32.mrb[0].mxu0
  %v379 = vadd.f32 0.0, %v378
  %380 = vmatprep.mubr.f32.mxu0 0.0
  %381 = vmatmul.mubr.f32.gmra.mrb[0].mxu0 %v306
  %v382 = vpop.f32.mrb[0].mxu0
  %v383 = vadd.f32 0.0, %v382
  %v384 = vpop.f32.mrb[0].mxu0
  %v385 = vadd.f32 0.0, %v384
  %386 = vmatprep.mubr.f32.mxu0 0.0
  %387 = vmatmul.mubr.f32.gmra.mrb[0].mxu0 %v305
  %v388 = vpop.f32.mrb[0].mxu0
  %v389 = vadd.f32 0.0, %v388
  %v390 = vpop.f32.mrb[0].mxu0
  %v391 = vadd.f32 0.0, %v390
  %392 = vdwg.mxu0
  %v393 = vadd.f32 %v285, %v377
  %v394 = vadd.f32 %v287, %v379
  %v395 = vadd.f32 %v291, %v383
  %v396 = vadd.f32 %v293, %v385
  %v397 = vadd.f32 %v297, %v389
  %v398 = vadd.f32 %v299, %v391
  %v400 = vlaneseq
  %v401 = vshrl.u32 %v400, 7
  %v402 = vsub.s32 0, %v401
  %v403 = vrot.slane %v112, %v402
  %v404 = vlaneseq
  %v405 = vshrl.u32 %v404, 7
  %v406 = vsub.s32 1, %v405
  %v407 = vrot.slane %v112, %v406
  %v410 = vadd.f32 %v393, %v403
  %v411 = vadd.f32 %v394, %v407
  %v412 = vadd.f32 %v395, %v403
  %v413 = vadd.f32 %v396, %v407
  %v414 = vadd.f32 %v397, %v403
  %v415 = vadd.f32 %v398, %v407
  %v416 = vmax.f32 %v410, 0.0
  %v417 = vmax.f32 %v411, 0.0
  %v418 = vmax.f32 %v412, 0.0
  %v419 = vmax.f32 %v413, 0.0
  %v420 = vmax.f32 %v414, 0.0
  %v421 = vmax.f32 %v415, 0.0
  %v422 = vsel %vm117, %v416, 0.0
  %v423 = vsel %vm117, %v417, 0.0
  %v424 = vsel %vm118, %v418, 0.0
  %v425 = vsel %vm118, %v419, 0.0
  %v426 = vsel %vm119, %v420, 0.0
  %v427 = vsel %vm119, %v421, 0.0
  %431 = vrot.lane.b32.xlu0 %v422, 64
  %v432 = vpop.permute.xlu0 %431
  %433 = vrot.lane.b32.xlu0 %v424, 64
  %v434 = vpop.permute.xlu0 %433
  %435 = vrot.lane.b32.xlu0 %v426, 64
  %v436 = vpop.permute.xlu0 %435
  %v440 = vmax.f32 %v422, %v432
  %v441 = vmax.f32 %v424, %v434
  %v442 = vmax.f32 %v426, %v436
  %v443 = vmax.f32 %v440, %v423
  %v444 = vmax.f32 %v441, %v425
  %v445 = vmax.f32 %v442, %v427
  %v449 = vrot.slane %v443, 1
  %v450 = vrot.slane %v444, 1
  %v451 = vsel %vm126, %v449, %v450
  %v452 = vrot.slane %v445, 1
  %v453 = vsel %vm126, %v450, %v452
  %v456 = vmax.f32 %v443, %v451
  %v457 = vmax.f32 %v444, %v453
  %v458 = vrot.slane %v443, 2
  %v459 = vrot.slane %v444, 2
  %v460 = vsel %vm301, %v458, %v459
  %v461 = vrot.slane %v445, 2
  %v462 = vsel %vm301, %v459, %v461
  %v465 = vmax.f32 %v456, %v460
  %v466 = vmax.f32 %v457, %v462
  %v468 = vrot.slane %v465, 1
  %v470 = vrot.slane %v465, 2
  %v472 = vrot.slane %v465, 3
  %v475 = vrot.slane %v466, 4
  %v477 = vrot.slane %v466, 5
  %v479 = vrot.slane %v466, 6
  %v481 = vrot.slane %v466, 7
  %vm483 = vcmask 1040384
  %v484 = vsel %vm483, %v465, %v468
  %vm485 = vcmask 1041408
  %v486 = vsel %vm485, %v484, %v470
  %vm487 = vcmask 1042432
  %v488 = vsel %vm487, %v486, %v472
  %vm489 = vcmask 1043456
  %v490 = vsel %vm489, %v488, %v475
  %vm491 = vcmask 1044480
  %v492 = vsel %vm491, %v490, %v477
  %v493 = vsel %vm301, %v492, %v479
  %v494 = vsel %vm126, %v493, %v481
  %vm495 = vcmask 523264
  %496 = vst.msk [vmem:[%s3] sm:$0xff] %vm495, %v494
  %s497 = scalar_lea.vmem %s0, 24
  %v498 = vld [vmem:[%s497] sm:$0xff]
  %v499 = vld [vmem:[%s497 + $0x8] sm:$0xff]
  %v500 = vld [vmem:[%s497 + $0x10] sm:$0xf]
  %v504 = vrot.slane %v498, 1
  %v505 = vrot.slane %v499, 1
  %v506 = vsel %vm126, %v504, %v505
  %v507 = vrot.slane %v500, 1
  %v508 = vsel %vm126, %v505, %v507
  %512 = vmatprep.subr.mxu0 %v48
  %513 = vmatpush1.msra.mxu0 %v47
  %514 = vmatprep.subr.mxu0 %v50
  %515 = vmatpush1.msra.mxu0 %v49
  %516 = vmatprep.subr.mxu0 %v52
  %517 = vmatpush1.msra.mxu0 %v51
  %518 = vmatprep.subr.mxu0 %v54
  %519 = vmatpush1.msra.mxu0 %v53
  %520 = vmatprep.subr.mxu0 %v56
  %521 = vmatpush1.msra.mxu0 %v55
  %522 = vmatprep.subr.mxu0 %v58
  %523 = vmatpush1.msra.mxu0 %v57
  %524 = vmatprep.subr.mxu0 %v60
  %525 = vmatpush1.msra.mxu0 %v59
  %526 = vmatprep.subr.mxu0 %v62
  %527 = vmatpush1.msra.mxu0 %v61
  %528 = vmatprep.subr.mxu0 %v64
  %529 = vmatpush1.msra.mxu0 %v63
  %530 = vmatprep.subr.mxu0 %v66
  %531 = vmatpush1.msra.mxu0 %v65
  %532 = vmatprep.subr.mxu0 %v68
  %533 = vmatpush1.msra.mxu0 %v67
  %534 = vmatprep.subr.mxu0 %v70
  %535 = vmatpush1.msra.mxu0 %v69
  %536 = vmatprep.subr.mxu0 %v72
  %537 = vmatpush1.msra.mxu0 %v71
  %538 = vmatprep.subr.mxu0 %v74
  %539 = vmatpush1.msra.mxu0 %v73
  %540 = vmatprep.subr.mxu0 %v76
  %541 = vmatpush1.msra.mxu0 %v75
  %542 = vmatprep.subr.mxu0 %v78
  %543 = vmatpush1.msra.mxu0 %v77
  %544 = vmatprep.subr.mxu0 0.0
  %545 = vmatpush1.msra.mxu0 0.0
  %546 = vmatprep.subr.mxu0 0.0
  %547 = vmatpush1.msra.mxu0 0.0
  %548 = vmatprep.subr.mxu0 0.0
  %549 = vmatpush1.msra.mxu0 0.0
  %550 = vmatprep.subr.mxu0 0.0
  %551 = vmatpush1.msra.mxu0 0.0
  %552 = vmatprep.subr.mxu0 0.0
  %553 = vmatpush1.msra.mxu0 0.0
  %554 = vmatprep.subr.mxu0 0.0
  %555 = vmatpush1.msra.mxu0 0.0
  %556 = vmatprep.subr.mxu0 0.0
  %557 = vmatpush1.msra.mxu0 0.0
  %558 = vmatprep.subr.mxu0 0.0
  %559 = vmatpush1.msra.mxu0 0.0
  %560 = vmatprep.subr.mxu0 0.0
  %561 = vmatpush1.msra.mxu0 0.0
  %562 = vmatprep.subr.mxu0 0.0
  %563 = vmatpush1.msra.mxu0 0.0
  %564 = vmatprep.subr.mxu0 0.0
  %565 = vmatpush1.msra.mxu0 0.0
  %566 = vmatprep.subr.mxu0 0.0
  %567 = vmatpush1.msra.mxu0 0.0
  %568 = vmatprep.subr.mxu0 0.0
  %569 = vmatpush1.msra.mxu0 0.0
  %570 = vmatprep.subr.mxu0 0.0
  %571 = vmatpush1.msra.mxu0 0.0
  %572 = vmatprep.subr.mxu0 0.0
  %573 = vmatpush1.msra.mxu0 0.0
  %574 = vmatprep.subr.mxu0 0.0
  %575 = vmatpush1.msra.mxu0 0.0
  %576 = vmatprep.mubr.f32.mxu0 0.0
  %577 = vmatmul.mubr.f32.gmra.mrb[0].mxu0 %v506
  %v578 = vpop.f32.mrb[0].mxu0
  %v579 = vadd.f32 0.0, %v578
  %v580 = vpop.f32.mrb[0].mxu0
  %v581 = vadd.f32 0.0, %v580
  %582 = vmatprep.mubr.f32.mxu0 0.0
  %583 = vmatmul.mubr.f32.gmra.mrb[0].mxu0 %v508
  %v584 = vpop.f32.mrb[0].mxu0
  %v585 = vadd.f32 0.0, %v584
  %v586 = vpop.f32.mrb[0].mxu0
  %v587 = vadd.f32 0.0, %v586
  %588 = vmatprep.mubr.f32.mxu0 0.0
  %589 = vmatmul.mubr.f32.gmra.mrb[0].mxu0 %v507
  %v590 = vpop.f32.mrb[0].mxu0
  %v591 = vadd.f32 0.0, %v590
  %v592 = vpop.f32.mrb[0].mxu0
  %v593 = vadd.f32 0.0, %v592
  %594 = vdwg.mxu0
  %595 = vmatprep.subr.mxu0 %v15
  %596 = vmatpush1.msra.mxu0 %v14
  %597 = vmatprep.subr.mxu0 %v17
  %598 = vmatpush1.msra.mxu0 %v16
  %599 = vmatprep.subr.mxu0 %v19
  %600 = vmatpush1.msra.mxu0 %v18
  %601 = vmatprep.subr.mxu0 %v21
  %602 = vmatpush1.msra.mxu0 %v20
  %603 = vmatprep.subr.mxu0 %v23
  %604 = vmatpush1.msra.mxu0 %v22
  %605 = vmatprep.subr.mxu0 %v25
  %606 = vmatpush1.msra.mxu0 %v24
  %607 = vmatprep.subr.mxu0 %v27
  %608 = vmatpush1.msra.mxu0 %v26
  %609 = vmatprep.subr.mxu0 %v29
  %610 = vmatpush1.msra.mxu0 %v28
  %611 = vmatprep.subr.mxu0 %v31
  %612 = vmatpush1.msra.mxu0 %v30
  %613 = vmatprep.subr.mxu0 %v33
  %614 = vmatpush1.msra.mxu0 %v32
  %615 = vmatprep.subr.mxu0 %v35
  %616 = vmatpush1.msra.mxu0 %v34
  %617 = vmatprep.subr.mxu0 %v37
  %618 = vmatpush1.msra.mxu0 %v36
  %619 = vmatprep.subr.mxu0 %v39
  %620 = vmatpush1.msra.mxu0 %v38
  %621 = vmatprep.subr.mxu0 %v41
  %622 = vmatpush1.msra.mxu0 %v40
  %623 = vmatprep.subr.mxu0 %v43
  %624 = vmatpush1.msra.mxu0 %v42
  %625 = vmatprep.subr.mxu0 %v45
  %626 = vmatpush1.msra.mxu0 %v44
  %627 = vmatprep.subr.mxu0 0.0
  %628 = vmatpush1.msra.mxu0 0.0
  %629 = vmatprep.subr.mxu0 0.0
  %630 = vmatpush1.msra.mxu0 0.0
  %631 = vmatprep.subr.mxu0 0.0
  %632 = vmatpush1.msra.mxu0 0.0
  %633 = vmatprep.subr.mxu0 0.0
  %634 = vmatpush1.msra.mxu0 0.0
  %635 = vmatprep.subr.mxu0 0.0
  %636 = vmatpush1.msra.mxu0 0.0
  %637 = vmatprep.subr.mxu0 0.0
  %638 = vmatpush1.msra.mxu0 0.0
  %639 = vmatprep.subr.mxu0 0.0
  %640 = vmatpush1.msra.mxu0 0.0
  %641 = vmatprep.subr.mxu0 0.0
  %642 = vmatpush1.msra.mxu0 0.0
  %643 = vmatprep.subr.mxu0 0.0
  %644 = vmatpush1.msra.mxu0 0.0
  %645 = vmatprep.subr.mxu0 0.0
  %646 = vmatpush1.msra.mxu0 0.0
  %647 = vmatprep.subr.mxu0 0.0
  %648 = vmatpush1.msra.mxu0 0.0
  %649 = vmatprep.subr.mxu0 0.0
  %650 = vmatpush1.msra.mxu0 0.0
  %651 = vmatprep.subr.mxu0 0.0
  %652 = vmatpush1.msra.mxu0 0.0
  %653 = vmatprep.subr.mxu0 0.0
  %654 = vmatpush1.msra.mxu0 0.0
  %655 = vmatprep.subr.mxu0 0.0
  %656 = vmatpush1.msra.mxu0 0.0
  %657 = vmatprep.subr.mxu0 0.0
  %658 = vmatpush1.msra.mxu0 0.0
  %659 = vmatprep.mubr.f32.mxu0 0.0
  %660 = vmatmul.mubr.f32.gmra.mrb[0].mxu0 %v498
  %v661 = vpop.f32.mrb[0].mxu0
  %v662 = vadd.f32 %v579, %v661
  %v663 = vpop.f32.mrb[0].mxu0
  %v664 = vadd.f32 %v581, %v663
  %665 = vmatprep.mubr.f32.mxu0 0.0
  %666 = vmatmul.mubr.f32.gmra.mrb[0].mxu0 %v499
  %v667 = vpop.f32.mrb[0].mxu0
  %v668 = vadd.f32 %v585, %v667
  %v669 = vpop.f32.mrb[0].mxu0
  %v670 = vadd.f32 %v587, %v669
  %671 = vmatprep.mubr.f32.mxu0 0.0
  %672 = vmatmul.mubr.f32.gmra.mrb[0].mxu0 %v500
  %v673 = vpop.f32.mrb[0].mxu0
  %v674 = vadd.f32 %v591, %v673
  %v675 = vpop.f32.mrb[0].mxu0
  %v676 = vadd.f32 %v593, %v675
  %677 = vdwg.mxu0
  %v678 = vrot.slane %v498, 2
  %v679 = vrot.slane %v499, 2
  %v680 = vsel %vm301, %v678, %v679
  %v681 = vrot.slane %v500, 2
  %v682 = vsel %vm301, %v679, %v681
  %686 = vmatprep.subr.mxu0 %v81
  %687 = vmatpush1.msra.mxu0 %v80
  %688 = vmatprep.subr.mxu0 %v83
  %689 = vmatpush1.msra.mxu0 %v82
  %690 = vmatprep.subr.mxu0 %v85
  %691 = vmatpush1.msra.mxu0 %v84
  %692 = vmatprep.subr.mxu0 %v87
  %693 = vmatpush1.msra.mxu0 %v86
  %694 = vmatprep.subr.mxu0 %v89
  %695 = vmatpush1.msra.mxu0 %v88
  %696 = vmatprep.subr.mxu0 %v91
  %697 = vmatpush1.msra.mxu0 %v90
  %698 = vmatprep.subr.mxu0 %v93
  %699 = vmatpush1.msra.mxu0 %v92
  %700 = vmatprep.subr.mxu0 %v95
  %701 = vmatpush1.msra.mxu0 %v94
  %702 = vmatprep.subr.mxu0 %v97
  %703 = vmatpush1.msra.mxu0 %v96
  %704 = vmatprep.subr.mxu0 %v99
  %705 = vmatpush1.msra.mxu0 %v98
  %706 = vmatprep.subr.mxu0 %v101
  %707 = vmatpush1.msra.mxu0 %v100
  %708 = vmatprep.subr.mxu0 %v103
  %709 = vmatpush1.msra.mxu0 %v102
  %710 = vmatprep.subr.mxu0 %v105
  %711 = vmatpush1.msra.mxu0 %v104
  %712 = vmatprep.subr.mxu0 %v107
  %713 = vmatpush1.msra.mxu0 %v106
  %714 = vmatprep.subr.mxu0 %v109
  %715 = vmatpush1.msra.mxu0 %v108
  %716 = vmatprep.subr.mxu0 %v111
  %717 = vmatpush1.msra.mxu0 %v110
  %718 = vmatprep.subr.mxu0 0.0
  %719 = vmatpush1.msra.mxu0 0.0
  %720 = vmatprep.subr.mxu0 0.0
  %721 = vmatpush1.msra.mxu0 0.0
  %722 = vmatprep.subr.mxu0 0.0
  %723 = vmatpush1.msra.mxu0 0.0
  %724 = vmatprep.subr.mxu0 0.0
  %725 = vmatpush1.msra.mxu0 0.0
  %726 = vmatprep.subr.mxu0 0.0
  %727 = vmatpush1.msra.mxu0 0.0
  %728 = vmatprep.subr.mxu0 0.0
  %729 = vmatpush1.msra.mxu0 0.0
  %730 = vmatprep.subr.mxu0 0.0
  %731 = vmatpush1.msra.mxu0 0.0
  %732 = vmatprep.subr.mxu0 0.0
  %733 = vmatpush1.msra.mxu0 0.0
  %734 = vmatprep.subr.mxu0 0.0
  %735 = vmatpush1.msra.mxu0 0.0
  %736 = vmatprep.subr.mxu0 0.0
  %737 = vmatpush1.msra.mxu0 0.0
  %738 = vmatprep.subr.mxu0 0.0
  %739 = vmatpush1.msra.mxu0 0.0
  %740 = vmatprep.subr.mxu0 0.0
  %741 = vmatpush1.msra.mxu0 0.0
  %742 = vmatprep.subr.mxu0 0.0
  %743 = vmatpush1.msra.mxu0 0.0
  %744 = vmatprep.subr.mxu0 0.0
  %745 = vmatpush1.msra.mxu0 0.0
  %746 = vmatprep.subr.mxu0 0.0
  %747 = vmatpush1.msra.mxu0 0.0
  %748 = vmatprep.subr.mxu0 0.0
  %749 = vmatpush1.msra.mxu0 0.0
  %750 = vmatprep.mubr.f32.mxu0 0.0
  %751 = vmatmul.mubr.f32.gmra.mrb[0].mxu0 %v680
  %v752 = vpop.f32.mrb[0].mxu0
  %v753 = vadd.f32 0.0, %v752
  %v754 = vpop.f32.mrb[0].mxu0
  %v755 = vadd.f32 0.0, %v754
  %756 = vmatprep.mubr.f32.mxu0 0.0
  %757 = vmatmul.mubr.f32.gmra.mrb[0].mxu0 %v682
  %v758 = vpop.f32.mrb[0].mxu0
  %v759 = vadd.f32 0.0, %v758
  %v760 = vpop.f32.mrb[0].mxu0
  %v761 = vadd.f32 0.0, %v760
  %762 = vmatprep.mubr.f32.mxu0 0.0
  %763 = vmatmul.mubr.f32.gmra.mrb[0].mxu0 %v681
  %v764 = vpop.f32.mrb[0].mxu0
  %v765 = vadd.f32 0.0, %v764
  %v766 = vpop.f32.mrb[0].mxu0
  %v767 = vadd.f32 0.0, %v766
  %768 = vdwg.mxu0
  %v769 = vadd.f32 %v662, %v753
  %v770 = vadd.f32 %v664, %v755
  %v771 = vadd.f32 %v668, %v759
  %v772 = vadd.f32 %v670, %v761
  %v773 = vadd.f32 %v674, %v765
  %v774 = vadd.f32 %v676, %v767
  %v775 = vadd.f32 %v769, %v403
  %v776 = vadd.f32 %v770, %v407
  %v777 = vadd.f32 %v771, %v403
  %v778 = vadd.f32 %v772, %v407
  %v779 = vadd.f32 %v773, %v403
  %v780 = vadd.f32 %v774, %v407
  %v781 = vmax.f32 %v775, 0.0
  %v782 = vmax.f32 %v776, 0.0
  %v783 = vmax.f32 %v777, 0.0
  %v784 = vmax.f32 %v778, 0.0
  %v785 = vmax.f32 %v779, 0.0
  %v786 = vmax.f32 %v780, 0.0
  %v787 = vsel %vm117, %v781, 0.0
  %v788 = vsel %vm117, %v782, 0.0
  %v789 = vsel %vm118, %v783, 0.0
  %v790 = vsel %vm118, %v784, 0.0
  %v791 = vsel %vm119, %v785, 0.0
  %v792 = vsel %vm119, %v786, 0.0
  %796 = vrot.lane.b32.xlu0 %v787, 64
  %v797 = vpop.permute.xlu0 %796
  %798 = vrot.lane.b32.xlu0 %v789, 64
  %v799 = vpop.permute.xlu0 %798
  %800 = vrot.lane.b32.xlu0 %v791, 64
  %v801 = vpop.permute.xlu0 %800
  %v805 = vmax.f32 %v787, %v797
  %v806 = vmax.f32 %v789, %v799
  %v807 = vmax.f32 %v791, %v801
  %v808 = vmax.f32 %v805, %v788
  %v809 = vmax.f32 %v806, %v790
  %v810 = vmax.f32 %v807, %v792
  %v814 = vrot.slane %v808, 1
  %v815 = vrot.slane %v809, 1
  %v816 = vsel %vm126, %v814, %v815
  %v817 = vrot.slane %v810, 1
  %v818 = vsel %vm126, %v815, %v817
  %v821 = vmax.f32 %v808, %v816
  %v822 = vmax.f32 %v809, %v818
  %v823 = vrot.slane %v808, 2
  %v824 = vrot.slane %v809, 2
  %v825 = vsel %vm301, %v823, %v824
  %v826 = vrot.slane %v810, 2
  %v827 = vsel %vm301, %v824, %v826
  %v830 = vmax.f32 %v821, %v825
  %v831 = vmax.f32 %v822, %v827
  %v833 = vrot.slane %v830, 1
  %v835 = vrot.slane %v830, 2
  %v837 = vrot.slane %v830, 3
  %v840 = vrot.slane %v831, 4
  %v842 = vrot.slane %v831, 5
  %v844 = vrot.slane %v831, 6
  %v846 = vrot.slane %v831, 7
  %v848 = vsel %vm483, %v830, %v833
  %v849 = vsel %vm485, %v848, %v835
  %v850 = vsel %vm487, %v849, %v837
  %v851 = vsel %vm489, %v850, %v840
  %v852 = vsel %vm491, %v851, %v842
  %v853 = vsel %vm301, %v852, %v844
  %v854 = vsel %vm126, %v853, %v846
  %855 = vst.msk [vmem:[%s3 + $0x8] sm:$0xff] %vm495, %v854
  // Predicated region
  $region14: #{convolutional_block_forward.1} parent=0 // pred_check
    _
  $region15: #{convolutional_block_forward.1} parent=0 // pred_check_branch
    %857 = sbr.rel (0) target = $region17
  $region16: #{convolutional_block_forward.1} parent=0 // pred_region
    _
  $region17: #{convolutional_block_forward.1} parent=0 // pred_fallthru
    _
  // Predicated region
  $region18: #{convolutional_block_forward.1} parent=0 // pred_check
    _
  $region19: #{convolutional_block_forward.1} parent=0 // pred_check_branch
    %859 = sbr.rel (0) target = $region21
  $region20: #{convolutional_block_forward.1} parent=0 // pred_region
    _
  $region21: #{convolutional_block_forward.1} parent=0 // pred_fallthru
    _

</llo_original>
